<compile_context>
chip_gen: v5e
topology: v5e:2x2
jax: 0.10.0
libtpu: 0.0.40
codegen_flags: <defaults>
</compile_context>

<pallas_src>
import functools

import jax
import jax.numpy as jnp
from jax.experimental import pallas as pl
from jax.experimental.pallas import tpu as pltpu

_LANE = 128


def prepare_mc_head_params(dense_w, dense_b, out_proj_w, *,
                           tn_target=1024, num_col_splits=2):
    """One-time (model-load) preprocessing of the RegressionHead weights.

    dense_w:    [H, H]  torch Linear layout (out_features x in_features)
    dense_b:    [H]
    out_proj_w: [1, H]
    """
    H_out, H_in = dense_w.shape

    n_pad = pl.cdiv(H_out, _LANE) * _LANE
    tn = min(tn_target, n_pad)
    n_steps = pl.cdiv(n_pad, tn)
    splits = max(1, min(num_col_splits, n_steps))
    n_steps = pl.cdiv(n_steps, splits) * splits        # divisible by splits
    n_pad = n_steps * tn

    # Zero-padded columns contribute exactly 0 (w1 col = 0, bias = 0, w2 = 0),
    # which keeps the column-axis accumulation exact.
    w1 = jnp.zeros((H_in, n_pad), jnp.bfloat16)
    w1 = w1.at[:, :H_out].set(dense_w.T.astype(jnp.bfloat16))
    bw = jnp.zeros((2, n_pad), jnp.float32)
    bw = bw.at[0, :H_out].set(dense_b.astype(jnp.float32))
    bw = bw.at[1, :H_out].set(out_proj_w.reshape(-1).astype(jnp.float32))

    return {
        "w1": w1,                       # [H_in, n_pad] bf16 (pre-transposed)
        "bw": bw,                       # [2, n_pad] f32 (row0=dense bias, row1=out_proj w)
        "tn": tn,
        "splits": splits,
        "steps_per_split": n_steps // splits,
    }


def _mc_head_kernel(x_ref, w1_ref, bw_ref, out_ref, acc_ref, *,
                    tn, steps_per_split):
    """One (split, row-tile, column-tile) step of the fused RegressionHead.

    x_ref  : [tm, H]     pooled encoder outputs (rows = batch * num_choices)
    w1_ref : [H, tn]     bf16 dense-weight slice (in x out layout)
    bw_ref : [2, n_pad]  f32 resident packed (dense bias, out_proj weight)
    out_ref: [tm, 1]     f32 partial per-row score for this column split
    acc_ref: [tm, 128]   f32 lane-dense accumulator scratch
    """
    j = pl.program_id(2)

    @pl.when(j == 0)
    def _():
        acc_ref[...] = jnp.zeros_like(acc_ref)

    # In-kernel bf16 cast (VPU, hidden under DMA/MXU); MXU accumulates in f32.
    x = x_ref[...].astype(jnp.bfloat16)
    h = jnp.dot(x, w1_ref[...], preferred_element_type=jnp.float32)

    # bias / out_proj weight are resident: dynamic lane slice, no per-step DMA.
    col = pl.multiple_of((pl.program_id(0) * steps_per_split + j) * tn, _LANE)
    bw = bw_ref[:, pl.ds(col, tn)]                      # [2, tn] f32
    h = jnp.tanh(h + bw[0:1, :])                        # EUP
    hw = h * bw[1:2, :]                                 # [tm, tn] f32

    # Lane-dense accumulation: fold tn -> 128 lanes with static-slice VPU adds.
    partial = hw[:, 0:_LANE]
    for k in range(1, tn // _LANE):
        partial = partial + hw[:, k * _LANE:(k + 1) * _LANE]
    acc_ref[...] += partial

    # Single cross-lane (XLU) reduce + narrow store, only on the last column step.
    @pl.when(j == steps_per_split - 1)
    def _():
        out_ref[...] = jnp.sum(acc_ref[...], axis=-1, keepdims=True)


def multiple_choice_forward(pooled, head_params, out_proj_b, *, tm_target=256):
    """pooled: [B, C, H] (f32 or bf16 straight from the encoder);
    head_params: output of prepare_mc_head_params; out_proj_b: [1].
    Returns logits [B, C] (f32)."""
    B, C, H = pooled.shape
    M = B * C

    w1 = head_params["w1"]
    bw = head_params["bw"]
    tn = head_params["tn"]
    splits = head_params["splits"]
    spp = head_params["steps_per_split"]
    n_pad = w1.shape[1]
    assert w1.shape[0] == H

    x = pooled.reshape(M, H)            # no cast, no pad (ragged last block OK)

    tm = M if M <= tm_target else tm_target
    m_blocks = pl.cdiv(M, tm)
    grid = (splits, m_blocks, spp)

    kernel = functools.partial(_mc_head_kernel, tn=tn, steps_per_split=spp)

    # Explicit VMEM budget: double-buffered x + w1 tiles, resident bw, scratch.
    vmem_est = (2 * tm * H * x.dtype.itemsize       # x (double-buffered)
                + 2 * H * tn * 2                    # w1 bf16 (double-buffered)
                + 2 * 2 * n_pad * 4                 # packed bias/out_proj w
                + tm * _LANE * 4                    # accumulator scratch
                + 2 * tm * 4)                       # output block
    vmem_limit = min(64 << 20, max(16 << 20, int(vmem_est * 1.5)))

    flops = 2 * M * H * n_pad + 4 * M * n_pad
    bytes_accessed = (M * H * x.dtype.itemsize          # x
                      + m_blocks * H * n_pad * 2        # w1 (per row block)
                      + 2 * n_pad * 4                   # bw
                      + splits * M * 4)                 # partial scores

    partial_scores = pl.pallas_call(
        kernel,
        out_shape=jax.ShapeDtypeStruct((splits, M, 1), jnp.float32),
        grid_spec=pltpu.PrefetchScalarGridSpec(
            num_scalar_prefetch=0,
            grid=grid,
            in_specs=[
                pl.BlockSpec((tm, H), lambda s, i, j: (i, 0)),
                pl.BlockSpec((H, tn), lambda s, i, j: (0, s * spp + j)),
                pl.BlockSpec((2, n_pad), lambda s, i, j: (0, 0)),   # resident
            ],
            out_specs=pl.BlockSpec((None, tm, 1), lambda s, i, j: (s, i, 0)),
            scratch_shapes=[pltpu.VMEM((tm, _LANE), jnp.float32)],
        ),
        compiler_params=pltpu.CompilerParams(
            dimension_semantics=("parallel", "parallel", "arbitrary"),
            vmem_limit_bytes=vmem_limit),
        cost_estimate=pl.CostEstimate(
            flops=flops,
            transcendentals=M * n_pad,
            bytes_accessed=bytes_accessed),
    )(x, w1, bw)

    scores = jnp.sum(partial_scores[:, :, 0], axis=0)      # [M]
    logits = scores + out_proj_b.astype(jnp.float32)       # scalar out_proj bias
    return logits.reshape(B, C)


def reference_forward(pooled, dense_w, dense_b, out_proj_w, out_proj_b):
    h = jnp.tanh(jnp.einsum("bci,oi->bco", pooled, dense_w) + dense_b)
    scores = jnp.einsum("bco,po->bcp", h, out_proj_w) + out_proj_b
    return scores[..., 0]


if __name__ == "__main__":
    # Small shapes consistent with the forward: batch=2, num_choices=4, hidden=32.
    B, C, H = 2, 4, 32
    key = jax.random.PRNGKey(0)
    k1, k2, k3, k4, k5 = jax.random.split(key, 5)

    pooled = jax.random.normal(k1, (B, C, H), dtype=jnp.float32)
    dense_w = jax.random.normal(k2, (H, H), dtype=jnp.float32) * 0.02
    dense_b = jax.random.normal(k3, (H,), dtype=jnp.float32) * 0.02
    out_proj_w = jax.random.normal(k4, (1, H), dtype=jnp.float32) * 0.02
    out_proj_b = jax.random.normal(k5, (1,), dtype=jnp.float32) * 0.02

    # One-time (model-load) weight preprocessing — outside the hot path.
    head_params = prepare_mc_head_params(dense_w, dense_b, out_proj_w)

    logits = multiple_choice_forward(pooled, head_params, out_proj_b)
    jax.block_until_ready(logits)

    ref = reference_forward(pooled, dense_w, dense_b, out_proj_w, out_proj_b)
    assert logits.shape == (B, C)
    # bf16 activations/weights vs f32 reference -> tolerance loosened accordingly.
    assert jnp.allclose(logits, ref, atol=1e-2, rtol=1e-2), (
        float(jnp.max(jnp.abs(logits - ref))))

    print("KERNEL_OK")
</pallas_src>

<mosaic_0001>
module attributes {stable_mosaic.version = 11 : i64} {
  func.func @_mc_head_kernel(%arg0: i32, %arg1: i32, %arg2: i32, %arg3: memref<8x32xf32, #tpu.memory_space<vmem>>, %arg4: memref<32x128xbf16, #tpu.memory_space<vmem>>, %arg5: memref<2x128xf32, #tpu.memory_space<vmem>>, %arg6: memref<1x8x1xf32, #tpu.memory_space<vmem>>, %arg7: memref<8x128xf32, #tpu.memory_space<vmem>>) attributes {dimension_semantics = [#tpu.dimension_semantics<parallel>, #tpu.dimension_semantics<parallel>, #tpu.dimension_semantics<arbitrary>], iteration_bounds = array<i64: 1, 1, 1>, scalar_prefetch = 0 : i64, scratch_operands = 1 : i64, tpu.core_type = #tpu.core_type<tc>, window_params = [{transform_indices = @transform_0, window_bounds = array<i64: 8, 32>}, {transform_indices = @transform_1, window_bounds = array<i64: 32, 128>}, {pipeline_mode = #tpu.pipeline_mode<synchronous>, transform_indices = @transform_2, window_bounds = array<i64: 2, 128>}, {transform_indices = @transform_3, window_bounds = array<i64: 1, 8, 1>}]} {
    %c0_i32 = arith.constant 0 : i32
    %0 = arith.cmpi eq, %arg2, %c0_i32 : i32
    %1 = arith.extui %0 : i1 to i32
    %c0_i32_0 = arith.constant 0 : i32
    %2 = arith.cmpi ne, %1, %c0_i32_0 : i32
    scf.if %2 {
      %cst_11 = arith.constant 0.000000e+00 : f32
      %26 = vector.broadcast %cst_11 : f32 to vector<8x128xf32>
      %c0_12 = arith.constant 0 : index
      %c0_13 = arith.constant 0 : index
      %27 = vector.load %arg7[%c0_12, %c0_13] : memref<8x128xf32, #tpu.memory_space<vmem>>, vector<8x128xf32>
      tpu.vector_store %arg7[%c0_12, %c0_13], %26 {strides = array<i32>} : memref<8x128xf32, #tpu.memory_space<vmem>>, vector<8x128xf32>,
    } else {
    }
    %c0 = arith.constant 0 : index
    %c0_1 = arith.constant 0 : index
    %3 = vector.load %arg3[%c0, %c0_1] : memref<8x32xf32, #tpu.memory_space<vmem>>, vector<8x32xf32>
    %4 = arith.truncf %3 : vector<8x32xf32> to vector<8x32xbf16>
    %c0_2 = arith.constant 0 : index
    %c0_3 = arith.constant 0 : index
    %5 = vector.load %arg4[%c0_2, %c0_3] : memref<32x128xbf16, #tpu.memory_space<vmem>>, vector<32x128xbf16>
    %cst = arith.constant dense<0.000000e+00> : vector<8x128xf32>
    %6 = tpu.matmul %4, %5, %cst {dimension_numbers = #tpu.dot_dimension_numbers<[1], [0], [0], [1], [0, 0, 1, 1], [], []>} : vector<8x32xbf16>, vector<32x128xbf16>, vector<8x128xf32> -> vector<8x128xf32>
    %c1_i32 = arith.constant 1 : i32
    %7 = arith.muli %arg0, %c1_i32 : i32
    %8 = arith.addi %7, %arg2 : i32
    %c128_i32 = arith.constant 128 : i32
    %9 = arith.muli %8, %c128_i32 : i32
    %10 = tpu.assume_multiple %9, 128 : i32
    %c0_4 = arith.constant 0 : index
    %11 = arith.index_cast %10 : i32 to index
    %12 = vector.load %arg5[%c0_4, %11] : memref<2x128xf32, #tpu.memory_space<vmem>>, vector<2x128xf32>
    %13 = vector.extract_strided_slice %12 {offsets = [0, 0], sizes = [1, 128], strides = [1, 1]} : vector<2x128xf32> to vector<1x128xf32>
    %14 = vector.broadcast %13 : vector<1x128xf32> to vector<8x128xf32>
    %15 = arith.addf %6, %14 : vector<8x128xf32>
    %16 = math.tanh %15 : vector<8x128xf32>
    %17 = vector.extract_strided_slice %12 {offsets = [1, 0], sizes = [1, 128], strides = [1, 1]} : vector<2x128xf32> to vector<1x128xf32>
    %18 = vector.broadcast %17 : vector<1x128xf32> to vector<8x128xf32>
    %19 = arith.mulf %16, %18 : vector<8x128xf32>
    %c0_5 = arith.constant 0 : index
    %c0_6 = arith.constant 0 : index
    %20 = vector.load %arg7[%c0_5, %c0_6] : memref<8x128xf32, #tpu.memory_space<vmem>>, vector<8x128xf32>
    %21 = arith.addf %20, %19 : vector<8x128xf32>
    %c0_7 = arith.constant 0 : index
    %c0_8 = arith.constant 0 : index
    %22 = vector.load %arg7[%c0_7, %c0_8] : memref<8x128xf32, #tpu.memory_space<vmem>>, vector<8x128xf32>
    tpu.vector_store %arg7[%c0_7, %c0_8], %21 {strides = array<i32>} : memref<8x128xf32, #tpu.memory_space<vmem>>, vector<8x128xf32>,
    %c0_i32_9 = arith.constant 0 : i32
    %23 = arith.cmpi eq, %arg2, %c0_i32_9 : i32
    %24 = arith.extui %23 : i1 to i32
    %c0_i32_10 = arith.constant 0 : i32
    %25 = arith.cmpi ne, %24, %c0_i32_10 : i32
    scf.if %25 {
      %c0_11 = arith.constant 0 : index
      %c0_12 = arith.constant 0 : index
      %26 = vector.load %arg7[%c0_11, %c0_12] : memref<8x128xf32, #tpu.memory_space<vmem>>, vector<8x128xf32>
      %cst_13 = arith.constant dense<0.000000e+00> : vector<8xf32>
      %27 = vector.multi_reduction <add>, %26, %cst_13 [1] : vector<8x128xf32> to vector<8xf32>
      %28 = vector.shape_cast %27 : vector<8xf32> to vector<8x1xf32>
      %c0_14 = arith.constant 0 : index
      %c0_15 = arith.constant 0 : index
      %c0_16 = arith.constant 0 : index
      %29 = vector.load %arg6[%c0_14, %c0_15, %c0_16] : memref<1x8x1xf32, #tpu.memory_space<vmem>>, vector<1x8x1xf32>
      %30 = vector.shape_cast %29 : vector<1x8x1xf32> to vector<8x1xf32>
      %31 = vector.shape_cast %28 : vector<8x1xf32> to vector<1x8x1xf32>
      tpu.vector_store %arg6[%c0_14, %c0_15, %c0_16], %31 {strides = array<i32>} : memref<1x8x1xf32, #tpu.memory_space<vmem>>, vector<1x8x1xf32>,
    } else {
    }
    return
  }
  func.func @transform_0(%arg0: i32, %arg1: i32, %arg2: i32) -> (i32, i32) {
    %c0_i32 = arith.constant 0 : i32
    %c0_i32_0 = arith.constant 0 : i32
    return %arg1, %c0_i32 : i32, i32
  }
  func.func @transform_1(%arg0: i32, %arg1: i32, %arg2: i32) -> (i32, i32) {
    %c1_i32 = arith.constant 1 : i32
    %0 = arith.muli %arg0, %c1_i32 : i32
    %1 = arith.addi %0, %arg2 : i32
    %c0_i32 = arith.constant 0 : i32
    %c0_i32_0 = arith.constant 0 : i32
    return %c0_i32, %1 : i32, i32
  }
  func.func @transform_2(%arg0: i32, %arg1: i32, %arg2: i32) -> (i32, i32) {
    %c0_i32 = arith.constant 0 : i32
    %c0_i32_0 = arith.constant 0 : i32
    %c0_i32_1 = arith.constant 0 : i32
    return %c0_i32, %c0_i32_0 : i32, i32
  }
  func.func @transform_3(%arg0: i32, %arg1: i32, %arg2: i32) -> (i32, i32, i32) {
    %c0_i32 = arith.constant 0 : i32
    %c0_i32_0 = arith.constant 0 : i32
    return %arg0, %arg1, %c0_i32 : i32, i32, i32
  }
}

</mosaic_0001>

<llo_original>
// kernel: tpu_custom_call.1
$region0: #{tpu_custom_call.1}
  #allocation0 [shape = 'u32[]', space=smem, size = 0x4, offset = 0x4, fixed_abs, tag = 'smem constant byte address 0x4 - core index']
  #allocation1 [shape = 'u32[72,128]{1,0:T(1,128)}', space=vmem, size = 0x9000, scoped, tag = 'internal scratch']
  #allocation2 [shape = 'f32[8,128]{1,0:T(8,128)}', space=vmem, size = 0x1000, scoped, tag = 'scratch operand']
  %s0 = inlined_call_operand.hbm [shape: f32[8,32], index: 0, kind: input, shape index: {}]
  %s1 = inlined_call_operand.hbm [shape: bf16[32,128], index: 1, kind: input, shape index: {}]
  %s2 = inlined_call_operand.hbm [shape: f32[2,128], index: 2, kind: input, shape index: {}]
  %s3 = inlined_call_operand.vmem [shape: f32[1,8,1], index: 3, kind: output, shape index: {}]
  %s4 = sld [smem:[#allocation0]]
  $region42: #{tpu_custom_call.1} parent=0
    _
  %s6 = ssub.s32 1, %s4
  %s7 = scalar_select 0, %s6, %s4
  $region1: #{tpu_custom_call.1} parent=0
    #allocation3 [shape = 'u8[4096]{0}', space=vmem, size = 0x1000, scoped, tag = 'input window, operand 0, single buffered']
    #allocation4 [shape = 's32[1]{0}', space=sflag, size = 0x4, scoped, tag = 'scoped memory for tpu_custom_call.1']
    #allocation5 [shape = 'u8[8192]{0}', space=vmem, size = 0x2000, scoped, tag = 'input window, operand 1, single buffered']
    #allocation6 [shape = 's32[1]{0}', space=sflag, size = 0x4, scoped, tag = 'scoped memory for tpu_custom_call.1']
    #allocation7 [shape = 'u8[1024]{0}', space=vmem, size = 0x400, scoped, tag = 'input window, operand 2, single buffered']
    %8 = vsyncpa [#allocation4], 0
    %9 = vsyncpa [#allocation6], 0
    // Predicated region
    $region2: #{tpu_custom_call.1} parent=1 // pred_check
      _
    $region3: #{tpu_custom_call.1} parent=1 // pred_check_branch
      %11 = sbr.rel (0) target = $region5
    $region4: #{tpu_custom_call.1} parent=1 // pred_region
      %13 = vsyncadd [#allocation4], 0
      %s15 = sshll.u32 %s0, 4
      %s16 = int_to_ptr.hbm [resolvable:$true] %s15
      %s17 = sshll.u32 [#allocation3], 4
      %s18 = int_to_ptr.vmem [resolvable:$true] %s17
      %20 = dma.hbm_to_vmem [thread:$0]  %s16, 128, %s18, [#allocation4]
    $region5: #{tpu_custom_call.1} parent=1 // pred_fallthru
      _
    // Predicated region
    $region6: #{tpu_custom_call.1} parent=1 // pred_check
      _
    $region7: #{tpu_custom_call.1} parent=1 // pred_check_branch
      %22 = sbr.rel (0) target = $region9
    $region8: #{tpu_custom_call.1} parent=1 // pred_region
      %s23 = sadd.s32 0, 0
      %25 = vsyncadd [#allocation6], 0
      %s26 = smul.addr %s23, 4
      %s27 = scalar_lea.hbm %s1, %s26
      %s28 = sshll.u32 %s27, 4
      %s29 = int_to_ptr.hbm [resolvable:$true] %s28
      %s30 = sshll.u32 [#allocation5], 4
      %s31 = int_to_ptr.vmem [resolvable:$true] %s30
      %36 = dma.hbm_to_vmem [thread:$0]  %s29, 256, %s31, [#allocation6], 64, 64, 4
    $region9: #{tpu_custom_call.1} parent=1 // pred_fallthru
      _
    // Predicated region
    $region10: #{tpu_custom_call.1} parent=1 // pred_check
      _
    $region11: #{tpu_custom_call.1} parent=1 // pred_check_branch
      %38 = sbr.rel (0) target = $region13
    $region12: #{tpu_custom_call.1} parent=1 // pred_region
      %40 = vsyncadd [#allocation6], 0
      %s42 = sshll.u32 %s2, 4
      %s43 = int_to_ptr.hbm [resolvable:$true] %s42
      %s44 = sshll.u32 [#allocation7], 4
      %s45 = int_to_ptr.vmem [resolvable:$true] %s44
      %47 = dma.hbm_to_vmem [thread:$0]  %s43, 32, %s45, [#allocation6]
    $region13: #{tpu_custom_call.1} parent=1 // pred_fallthru
      _
    // Predicated region
    $region14: #{tpu_custom_call.1} parent=1 // pred_check
      _
    $region15: #{tpu_custom_call.1} parent=1 // pred_check_branch
      %49 = sbr.rel (0) target = $region17
    $region16: #{tpu_custom_call.1} parent=1 // pred_region
      %51 = dma.done [#allocation4], 128
    $region17: #{tpu_custom_call.1} parent=1 // pred_fallthru
      _
    // Predicated region
    $region18: #{tpu_custom_call.1} parent=1 // pred_check
      _
    $region19: #{tpu_custom_call.1} parent=1 // pred_check_branch
      %53 = sbr.rel (0) target = $region21
    $region20: #{tpu_custom_call.1} parent=1 // pred_region
      %55 = dma.done [#allocation6], 256
    $region21: #{tpu_custom_call.1} parent=1 // pred_fallthru
      _
    // Predicated region
    $region22: #{tpu_custom_call.1} parent=1 // pred_check
      _
    $region23: #{tpu_custom_call.1} parent=1 // pred_check_branch
      %57 = sbr.rel (0) target = $region25
    $region24: #{tpu_custom_call.1} parent=1 // pred_region
      %59 = dma.done [#allocation6], 32
    $region25: #{tpu_custom_call.1} parent=1 // pred_fallthru
      _
    %s60 = sadd.s32 0, 0
    %p62 = scmp.eq.s32.totalorder 0, 0
    // Predicated region
    $region26: #{tpu_custom_call.1} parent=1 // pred_check
      %p63 = pneg %p62
    $region27: #{tpu_custom_call.1} parent=1 // pred_check_branch
      %65 = sbr.rel (%p63) target = $region29
    $region28: #{tpu_custom_call.1} parent=1 // pred_region
      %66 = vst [vmem:[#allocation2] sm:$0xff] 0.0
    $region29: #{tpu_custom_call.1} parent=1 // pred_fallthru
      _
    %v67 = vld [vmem:[#allocation3] sm:$0xff]
    %v68 = vpack.c.bf16 %v67, %v67
    %v69 = vld [vmem:[#allocation5] sm:$0xf]
    %v70 = vld [vmem:[#allocation5 + $0x4] sm:$0xf]
    %v71 = vld [vmem:[#allocation5 + $0x8] sm:$0xf]
    %v72 = vld [vmem:[#allocation5 + $0xc] sm:$0xf]
    %s73 = sadd.s32 0, 0
    %s74 = smul.u32 %s73, 128
    %s75 = sshra.s32 %s74, 7
    %s76 = sand.u32 %s74, 127
    %s77 = scalar_lea.vmem [#allocation7], %s75
    %v78 = vld [vmem:[%s77] sm:$0x3]
    %v79 = vperm.slane %v78, 0
    %v84 = vunpack.c.l.b16 %v69
    %v85 = vunpack.c.l.b16 %v70
    %v86 = vunpack.c.l.b16 %v71
    %v87 = vunpack.c.l.b16 %v72
    %v88 = vpack.c.b16 %v85, %v84
    %v89 = vpack.c.b16 %v87, %v86
    %vm92 = vcmask 261120
    %v94 = vsel %vm92, %v68, 0
    %96 = vmatpush.bf16.msra.mxu0 0
    %97 = vmatpush.bf16.msra.mxu0 0
    %98 = vmatpush.bf16.msra.mxu0 0
    %99 = vmatpush.bf16.msra.mxu0 0
    %100 = vmatpush.bf16.msra.mxu0 0
    %101 = vmatpush.bf16.msra.mxu0 0
    %102 = vmatpush.bf16.msra.mxu0 %v89
    %103 = vmatpush.bf16.msra.mxu0 %v88
    %104 = vmatmul.bf16.gmra.mxu0 %v94
    %v105 = vpop.f32.mrf.mxu0
    %v106 = vadd.f32 %v79, %v105
    %v107 = vpop.f32.mrf.mxu0
    %108 = vdwg.mxu0
    %v109 = vtanh.pop %v106
    %v110 = vperm.slane %v78, 1
    %v111 = vmul.f32 %v109, %v110
    %v112 = vld [vmem:[#allocation2] sm:$0xff]
    %v113 = vadd.f32 %v112, %v111
    %114 = vst [vmem:[#allocation2] sm:$0xff] %v113
    // Predicated region
    $region30: #{tpu_custom_call.1} parent=1 // pred_check
      %p115 = pneg %p62
    $region31: #{tpu_custom_call.1} parent=1 // pred_check_branch
      %117 = sbr.rel (%p115) target = $region33
    $region32: #{tpu_custom_call.1} parent=1 // pred_region
      %v118 = vld [vmem:[#allocation2] sm:$0xff]
      %119 = vadd.xlane.f32.xlu0 %v118
      %v120 = vpop.xlane.xlu0 %119
      %vm121 = vcmask 7168
      %122 = vst.msk [vmem:[%s3] sm:$0xff] %vm121, %v120
    $region33: #{tpu_custom_call.1} parent=1 // pred_fallthru
      _
    // Predicated region
    $region34: #{tpu_custom_call.1} parent=1 // pred_check
      _
    $region35: #{tpu_custom_call.1} parent=1 // pred_check_branch
      %124 = sbr.rel (0) target = $region37
    $region36: #{tpu_custom_call.1} parent=1 // pred_region
      _
    $region37: #{tpu_custom_call.1} parent=1 // pred_fallthru
      _
    // Predicated region
    $region38: #{tpu_custom_call.1} parent=1 // pred_check
      _
    $region39: #{tpu_custom_call.1} parent=1 // pred_check_branch
      %126 = sbr.rel (0) target = $region41
    $region40: #{tpu_custom_call.1} parent=1 // pred_region
      _
    $region41: #{tpu_custom_call.1} parent=1 // pred_fallthru
      _
    %127 = vsyncpa [#allocation4], 1
    %128 = vsyncpa [#allocation6], 1

</llo_original>
